<compile_context>
chip_gen: v7x
topology: tpu7x:2x2x1
jax: 0.10.0
libtpu: 0.0.40
codegen_flags: <defaults>
</compile_context>

<pallas_src>
import jax
import jax.numpy as jnp
from jax import lax
from jax.experimental import pallas as pl
from jax.experimental.pallas import tpu as pltpu


def _elu(x):
    # PyTorch nn.ELU(alpha=1.0); exp(x)-1 form (semantically identical).
    return jnp.where(x > 0, x, jnp.exp(x) - 1.0)


def _vmem_capacity_bytes():
    try:
        info = pltpu.get_tpu_info()
        cap = getattr(info, "vmem_capacity_bytes", None)
        if cap:
            return int(cap)
    except Exception:
        pass
    return 64 * 1024 * 1024  # conservative fallback (v7x per-TC VMEM)


def _make_kernel(dilation, ksize, pad, tile_l, mm_dtype, use_roll):
    shifts = [k * dilation - pad for k in range(ksize)]

    def kernel(x_ref, halo_ref, w1_ref, b1_ref, w2_ref, b2_ref, o_ref, hext_ref):
        # x_ref:    (1, C, T)         current tile of x (storage dtype)
        # halo_ref: (1, 1, C, 2*pad)  [left halo | right halo] of x
        # w1_ref:   (K, C, C)         dilated conv taps (storage dtype)
        # b1_ref:   (C, 1)  f32
        # w2_ref:   (C, C)            1x1 conv (storage dtype)
        # b2_ref:   (C, 1)  f32
        # o_ref:    (1, C, T)
        # hext_ref: (C, T) f32 VMEM scratch holding the halo lanes
        x_f32 = x_ref[0].astype(jnp.float32)                       # (C, T)
        a = _elu(x_f32)                                            # (C, T) f32
        halo_e = _elu(halo_ref[0, 0].astype(jnp.float32))          # (C, 2p) f32

        acc = None
        if use_roll:
            # Place the right halo at lanes [0, pad) and the left halo at
            # lanes [T-pad, T).  Middle lanes are never selected by the masks
            # below, so they may hold stale data.
            hext_ref[:, :pad] = halo_e[:, pad:]
            hext_ref[:, tile_l - pad:] = halo_e[:, :pad]
            h_ext = hext_ref[...]                                  # (C, T)
            lane = lax.broadcasted_iota(jnp.int32, a.shape, 1)
            for k, s in enumerate(shifts):
                if s == 0:
                    op = a
                elif s < 0:
                    # operand[t] = a[t+s] for t >= -s, left halo otherwise
                    m = jnp.where(lane >= tile_l + s, h_ext, a)
                    op = pltpu.roll(m, shift=-s, axis=1)
                else:
                    # operand[t] = a[t+s] for t < T-s, right halo otherwise
                    m = jnp.where(lane < s, h_ext, a)
                    op = pltpu.roll(m, shift=tile_l - s, axis=1)
                contrib = jnp.dot(w1_ref[k], op.astype(mm_dtype),
                                  preferred_element_type=jnp.float32)
                acc = contrib if acc is None else acc + contrib
        else:
            # Tiny single-tile fallback (tile_l not 128-aligned): explicit
            # stitch; cheap at these sizes.
            a_ext = jnp.concatenate([halo_e[:, :pad], a, halo_e[:, pad:]],
                                    axis=1)                        # (C, T+2p)
            for k in range(ksize):
                op = a_ext[:, k * dilation:k * dilation + tile_l]
                contrib = jnp.dot(w1_ref[k], op.astype(mm_dtype),
                                  preferred_element_type=jnp.float32)
                acc = contrib if acc is None else acc + contrib

        h = _elu(acc + b1_ref[...])                                # f32
        y = jnp.dot(w2_ref[...], h.astype(mm_dtype),
                    preferred_element_type=jnp.float32) + b2_ref[...]
        o_ref[0] = (y + x_f32).astype(o_ref.dtype)

    return kernel


def _pick_tile_l(L, c, ksize, pad, batch, elem_bytes):
    """Largest 128-multiple divisor of L fitting the VMEM budget."""
    budget = int(_vmem_capacity_bytes() * 0.70)
    # fixed: double-buffered weights + halo blocks + biases
    fixed = 2 * (ksize + 1) * c * c * elem_bytes       # w1 (K,C,C) + w2 (C,C)
    fixed += 2 * 2 * pad * c * elem_bytes              # halo blocks
    fixed += 4 * 2 * c * 4                             # biases (f32)
    # per-lane: x/out blocks (double-buffered) + f32 scratch/temporaries
    per_lane = 4 * c * elem_bytes + 40 * c
    avail = max(budget - fixed, 0)
    cap = max((avail // per_lane) // 128 * 128, 128)
    if batch == 1:
        half = (L // 2) // 128 * 128                   # keep >= 2 tiles so
        if half >= 128:                                # both megacore TCs work
            cap = min(cap, half)
    t = min(cap, (L // 128) * 128)
    while t >= 128:
        if L % t == 0 and t >= 2 * pad:
            return t
        t -= 128
    # TODO(synk): ragged last tile unsupported; fall back to one tile per row.
    return L


def _pad_channels(arr, axis, c_to):
    c = arr.shape[axis]
    if c == c_to:
        return arr
    widths = [(0, 0)] * arr.ndim
    widths[axis] = (0, c_to - c)
    return jnp.pad(arr, widths)


def residual_unit_forward(x, w1, b1, w2, b2, dilation, *,
                          compute_dtype=jnp.bfloat16, tile_l=None):
    """x: (B, C, L); w1: (C, C, K); b1: (C,); w2: (C, C); b2: (C,).
    Returns (B, C, L) in compute_dtype."""
    B, C_in, L = x.shape
    C_out, C_in_w, K = w1.shape
    assert C_in_w == C_in and C_out == C_in, "residual requires in==out channels"
    pad = dilation * (K - 1) // 2
    assert pad >= 1

    mm_dtype = jnp.dtype(compute_dtype)
    eb = mm_dtype.itemsize
    c_align = {1: 32, 2: 16, 4: 8}.get(eb, 8)
    C_p = ((C_out + c_align - 1) // c_align) * c_align

    if tile_l is None:
        tile_l = _pick_tile_l(L, C_p, K, pad, B, eb)
    assert L % tile_l == 0, "L must be divisible by the lane tile"
    assert tile_l == L or tile_l % 128 == 0, "lane tile must be 128-aligned"
    nt = L // tile_l
    assert pad <= tile_l
    if nt > 1:
        assert 2 * pad <= tile_l

    xs = _pad_channels(x.astype(mm_dtype), 1, C_p)          # (B, C_p, L)

    # Halo side tensor (B, nt, C_p, 2*pad): [tail of tile j-1 | head of j+1],
    # zeros at the sequence boundaries (ELU(0)=0 matches pad-after-activation).
    if nt == 1:
        halos = jnp.zeros((B, 1, C_p, 2 * pad), mm_dtype)
    else:
        xb = xs.reshape(B, C_p, nt, tile_l)
        zed = jnp.zeros((B, C_p, 1, pad), mm_dtype)
        left = jnp.concatenate([zed, xb[:, :, :-1, tile_l - pad:]], axis=2)
        right = jnp.concatenate([xb[:, :, 1:, :pad], zed], axis=2)
        halos = jnp.concatenate([left, right], axis=3).transpose(0, 2, 1, 3)

    # Weights: (K, C_p, C_p) so the kernel slices one tap with a cheap
    # leading-axis index; biases stay f32.
    w1_p = _pad_channels(_pad_channels(w1, 0, C_p), 1, C_p)
    w1_t = jnp.transpose(w1_p, (2, 0, 1)).astype(mm_dtype)   # (K, C_p, C_p)
    w2_p = _pad_channels(_pad_channels(w2, 0, C_p), 1, C_p).astype(mm_dtype)
    b1_p = _pad_channels(b1, 0, C_p).astype(jnp.float32).reshape(C_p, 1)
    b2_p = _pad_channels(b2, 0, C_p).astype(jnp.float32).reshape(C_p, 1)

    vmem_cap = _vmem_capacity_bytes()
    vmem_limit = min(int(vmem_cap * 0.85), vmem_cap - 8 * 1024 * 1024)

    use_roll = (tile_l % 128 == 0)
    kernel = _make_kernel(dilation, K, pad, tile_l, mm_dtype, use_roll)

    out = pl.pallas_call(
        kernel,
        out_shape=jax.ShapeDtypeStruct((B, C_p, L), mm_dtype),
        grid_spec=pltpu.PrefetchScalarGridSpec(
            num_scalar_prefetch=0,
            grid=(B, nt),
            in_specs=[
                pl.BlockSpec((1, C_p, tile_l), lambda b, j: (b, 0, j)),
                pl.BlockSpec((1, 1, C_p, 2 * pad), lambda b, j: (b, j, 0, 0)),
                pl.BlockSpec((K, C_p, C_p), lambda b, j: (0, 0, 0)),
                pl.BlockSpec((C_p, 1), lambda b, j: (0, 0)),
                pl.BlockSpec((C_p, C_p), lambda b, j: (0, 0)),
                pl.BlockSpec((C_p, 1), lambda b, j: (0, 0)),
            ],
            out_specs=pl.BlockSpec((1, C_p, tile_l), lambda b, j: (b, 0, j)),
            scratch_shapes=[pltpu.VMEM((C_p, tile_l), jnp.float32)],
        ),
        compiler_params=pltpu.CompilerParams(
            dimension_semantics=("parallel", "parallel"),
            vmem_limit_bytes=vmem_limit),
    )(xs, halos, w1_t, b1_p, w2_p, b2_p)
    return out[:, :C_out, :]


def weight_norm_effective(v, g):
    # nn.utils.parametrizations.weight_norm default dim=0:
    # w = g * v / ||v||, norm over all dims except dim 0.
    norm = jnp.sqrt(jnp.sum(v * v, axis=tuple(range(1, v.ndim)), keepdims=True))
    return g.reshape((-1,) + (1,) * (v.ndim - 1)) * v / norm


def reference_forward(x, w1, b1, w2, b2, dilation):
    # Pure-JAX f32 reference (matches PyTorch ResidualUnit.forward, eval mode).
    K = w1.shape[2]
    pad = dilation * (K - 1) // 2
    a = _elu(x)
    y = lax.conv_general_dilated(
        a, w1, window_strides=(1,), padding=[(pad, pad)],
        rhs_dilation=(dilation,), dimension_numbers=("NCH", "OIH", "NCH"),
        precision=lax.Precision.HIGHEST)
    y = y + b1[None, :, None]
    h = _elu(y)
    z = lax.conv_general_dilated(
        h, w2[..., None], window_strides=(1,), padding=[(0, 0)],
        dimension_numbers=("NCH", "OIH", "NCH"),
        precision=lax.Precision.HIGHEST)
    z = z + b2[None, :, None]
    return z + x


def _make_params(key, C, K):
    k2, k3, k4, k5, k6, k7 = jax.random.split(key, 6)
    v1 = jax.random.normal(k2, (C, C, K), dtype=jnp.float32) * 0.2
    g1 = jax.random.uniform(k3, (C,), dtype=jnp.float32, minval=0.5, maxval=1.5)
    b1 = jax.random.normal(k4, (C,), dtype=jnp.float32) * 0.1
    v2 = jax.random.normal(k5, (C, C, 1), dtype=jnp.float32) * 0.2
    g2 = jax.random.uniform(k6, (C,), dtype=jnp.float32, minval=0.5, maxval=1.5)
    b2 = jax.random.normal(k7, (C,), dtype=jnp.float32) * 0.1
    w1_eff = weight_norm_effective(v1, g1)            # (C, C, K)
    w2_eff = weight_norm_effective(v2, g2)[:, :, 0]   # (C, C)
    return w1_eff, b1, w2_eff, b2


if __name__ == "__main__":
    key = jax.random.PRNGKey(0)
    kx1, kp1, kx2, kp2, kx3, kp3 = jax.random.split(key, 6)
    K = 7

    # Test 1: exact f32 path, channel padding (4 -> 8), tiny single lane tile.
    B, C, L, dil = 2, 4, 16, 3
    x = jax.random.normal(kx1, (B, C, L), dtype=jnp.float32)
    w1, b1, w2, b2 = _make_params(kp1, C, K)
    out = residual_unit_forward(x, w1, b1, w2, b2, dil,
                                compute_dtype=jnp.float32)
    out = jax.block_until_ready(out)
    ref = reference_forward(x, w1, b1, w2, b2, dil)
    assert out.shape == (B, C, L)
    assert jnp.allclose(out, ref, atol=1e-3, rtol=1e-3), "mismatch (f32 case)"

    # Test 2: bf16 storage/MXU path, tiled halo + roll path (nt = 4).
    B2, C2, L2, dil2 = 1, 8, 512, 3
    x2 = jax.random.normal(kx2, (B2, C2, L2), dtype=jnp.float32)
    w1b, b1b, w2b, b2b = _make_params(kp2, C2, K)
    out2 = residual_unit_forward(x2, w1b, b1b, w2b, b2b, dil2, tile_l=128)
    out2 = jax.block_until_ready(out2)
    ref2 = reference_forward(x2, w1b, b1b, w2b, b2b, dil2)
    assert out2.shape == (B2, C2, L2)
    assert jnp.allclose(out2.astype(jnp.float32), ref2,
                        atol=1e-1, rtol=1e-1), "mismatch (bf16 tiled case)"

    # Test 3: bf16, auto tile selection + B==1 megacore split (nt >= 2).
    B3, C3, L3, dil3 = 1, 16, 1024, 9
    x3 = jax.random.normal(kx3, (B3, C3, L3), dtype=jnp.float32)
    w1c, b1c, w2c, b2c = _make_params(kp3, C3, K)
    out3 = residual_unit_forward(x3, w1c, b1c, w2c, b2c, dil3)
    out3 = jax.block_until_ready(out3)
    ref3 = reference_forward(x3, w1c, b1c, w2c, b2c, dil3)
    assert out3.shape == (B3, C3, L3)
    assert jnp.allclose(out3.astype(jnp.float32), ref3,
                        atol=1e-1, rtol=1e-1), "mismatch (bf16 auto-tile case)"

    print("KERNEL_OK")
</pallas_src>

<mosaic_0001>
module attributes {stable_mosaic.version = 11 : i64} {
  func.func @kernel(%arg0: i32, %arg1: i32, %arg2: memref<1x8x16xf32, #tpu.memory_space<vmem>>, %arg3: memref<1x1x8x18xf32, #tpu.memory_space<vmem>>, %arg4: memref<7x8x8xf32, #tpu.memory_space<vmem>>, %arg5: memref<8x1xf32, #tpu.memory_space<vmem>>, %arg6: memref<8x8xf32, #tpu.memory_space<vmem>>, %arg7: memref<8x1xf32, #tpu.memory_space<vmem>>, %arg8: memref<1x8x16xf32, #tpu.memory_space<vmem>>, %arg9: memref<8x16xf32, #tpu.memory_space<vmem>>) attributes {dimension_semantics = [#tpu.dimension_semantics<parallel>, #tpu.dimension_semantics<parallel>], iteration_bounds = array<i64: 2, 1>, scalar_prefetch = 0 : i64, scratch_operands = 1 : i64, tpu.core_type = #tpu.core_type<tc>, window_params = [{transform_indices = @transform_0, window_bounds = array<i64: 1, 8, 16>}, {transform_indices = @transform_1, window_bounds = array<i64: 1, 1, 8, 18>}, {pipeline_mode = #tpu.pipeline_mode<synchronous>, transform_indices = @transform_2, window_bounds = array<i64: 7, 8, 8>}, {pipeline_mode = #tpu.pipeline_mode<synchronous>, transform_indices = @transform_3, window_bounds = array<i64: 8, 1>}, {pipeline_mode = #tpu.pipeline_mode<synchronous>, transform_indices = @transform_4, window_bounds = array<i64: 8, 8>}, {pipeline_mode = #tpu.pipeline_mode<synchronous>, transform_indices = @transform_5, window_bounds = array<i64: 8, 1>}, {transform_indices = @transform_6, window_bounds = array<i64: 1, 8, 16>}]} {
    %c0 = arith.constant 0 : index
    %c0_0 = arith.constant 0 : index
    %c0_1 = arith.constant 0 : index
    %0 = vector.load %arg2[%c0, %c0_0, %c0_1] : memref<1x8x16xf32, #tpu.memory_space<vmem>>, vector<1x8x16xf32>
    %1 = vector.shape_cast %0 : vector<1x8x16xf32> to vector<8x16xf32>
    %cst = arith.constant 0.000000e+00 : f32
    %2 = vector.broadcast %cst : f32 to vector<8x16xf32>
    %3 = arith.cmpf ogt, %1, %2 : vector<8x16xf32>
    %4 = math.exp %1 : vector<8x16xf32>
    %cst_2 = arith.constant 1.000000e+00 : f32
    %5 = vector.broadcast %cst_2 : f32 to vector<8x16xf32>
    %6 = arith.subf %4, %5 : vector<8x16xf32>
    %7 = arith.select %3, %1, %6 : vector<8x16xi1>, vector<8x16xf32>
    %c0_3 = arith.constant 0 : index
    %c0_4 = arith.constant 0 : index
    %c0_5 = arith.constant 0 : index
    %c0_6 = arith.constant 0 : index
    %8 = vector.load %arg3[%c0_3, %c0_4, %c0_5, %c0_6] : memref<1x1x8x18xf32, #tpu.memory_space<vmem>>, vector<1x1x8x18xf32>
    %9 = vector.shape_cast %8 : vector<1x1x8x18xf32> to vector<8x18xf32>
    %cst_7 = arith.constant 0.000000e+00 : f32
    %10 = vector.broadcast %cst_7 : f32 to vector<8x18xf32>
    %11 = arith.cmpf ogt, %9, %10 : vector<8x18xf32>
    %12 = math.exp %9 : vector<8x18xf32>
    %cst_8 = arith.constant 1.000000e+00 : f32
    %13 = vector.broadcast %cst_8 : f32 to vector<8x18xf32>
    %14 = arith.subf %12, %13 : vector<8x18xf32>
    %15 = arith.select %11, %9, %14 : vector<8x18xi1>, vector<8x18xf32>
    %16 = vector.extract_strided_slice %15 {offsets = [0, 0], sizes = [8, 9], strides = [1, 1]} : vector<8x18xf32> to vector<8x9xf32>
    %17 = vector.extract_strided_slice %15 {offsets = [0, 9], sizes = [8, 9], strides = [1, 1]} : vector<8x18xf32> to vector<8x9xf32>
    %18 = tpu.concatenate %16, %7, %17 in 1 : vector<8x9xf32>, vector<8x16xf32>, vector<8x9xf32> -> vector<8x34xf32>
    %19 = vector.extract_strided_slice %18 {offsets = [0, 0], sizes = [8, 16], strides = [1, 1]} : vector<8x34xf32> to vector<8x16xf32>
    %c0_9 = arith.constant 0 : index
    %c0_10 = arith.constant 0 : index
    %c0_11 = arith.constant 0 : index
    %20 = vector.load %arg4[%c0_9, %c0_10, %c0_11] : memref<7x8x8xf32, #tpu.memory_space<vmem>>, vector<1x8x8xf32>
    %21 = vector.shape_cast %20 : vector<1x8x8xf32> to vector<8x8xf32>
    %cst_12 = arith.constant dense<0.000000e+00> : vector<8x16xf32>
    %22 = tpu.matmul %21, %19, %cst_12 {dimension_numbers = #tpu.dot_dimension_numbers<[1], [0], [0], [1], [0, 0, 1, 1], [], []>} : vector<8x8xf32>, vector<8x16xf32>, vector<8x16xf32> -> vector<8x16xf32>
    %23 = vector.extract_strided_slice %18 {offsets = [0, 3], sizes = [8, 16], strides = [1, 1]} : vector<8x34xf32> to vector<8x16xf32>
    %c1 = arith.constant 1 : index
    %c0_13 = arith.constant 0 : index
    %c0_14 = arith.constant 0 : index
    %24 = vector.load %arg4[%c1, %c0_13, %c0_14] : memref<7x8x8xf32, #tpu.memory_space<vmem>>, vector<1x8x8xf32>
    %25 = vector.shape_cast %24 : vector<1x8x8xf32> to vector<8x8xf32>
    %cst_15 = arith.constant dense<0.000000e+00> : vector<8x16xf32>
    %26 = tpu.matmul %25, %23, %cst_15 {dimension_numbers = #tpu.dot_dimension_numbers<[1], [0], [0], [1], [0, 0, 1, 1], [], []>} : vector<8x8xf32>, vector<8x16xf32>, vector<8x16xf32> -> vector<8x16xf32>
    %27 = arith.addf %22, %26 : vector<8x16xf32>
    %28 = vector.extract_strided_slice %18 {offsets = [0, 6], sizes = [8, 16], strides = [1, 1]} : vector<8x34xf32> to vector<8x16xf32>
    %c2 = arith.constant 2 : index
    %c0_16 = arith.constant 0 : index
    %c0_17 = arith.constant 0 : index
    %29 = vector.load %arg4[%c2, %c0_16, %c0_17] : memref<7x8x8xf32, #tpu.memory_space<vmem>>, vector<1x8x8xf32>
    %30 = vector.shape_cast %29 : vector<1x8x8xf32> to vector<8x8xf32>
    %cst_18 = arith.constant dense<0.000000e+00> : vector<8x16xf32>
    %31 = tpu.matmul %30, %28, %cst_18 {dimension_numbers = #tpu.dot_dimension_numbers<[1], [0], [0], [1], [0, 0, 1, 1], [], []>} : vector<8x8xf32>, vector<8x16xf32>, vector<8x16xf32> -> vector<8x16xf32>
    %32 = arith.addf %27, %31 : vector<8x16xf32>
    %33 = vector.extract_strided_slice %18 {offsets = [0, 9], sizes = [8, 16], strides = [1, 1]} : vector<8x34xf32> to vector<8x16xf32>
    %c3 = arith.constant 3 : index
    %c0_19 = arith.constant 0 : index
    %c0_20 = arith.constant 0 : index
    %34 = vector.load %arg4[%c3, %c0_19, %c0_20] : memref<7x8x8xf32, #tpu.memory_space<vmem>>, vector<1x8x8xf32>
    %35 = vector.shape_cast %34 : vector<1x8x8xf32> to vector<8x8xf32>
    %cst_21 = arith.constant dense<0.000000e+00> : vector<8x16xf32>
    %36 = tpu.matmul %35, %33, %cst_21 {dimension_numbers = #tpu.dot_dimension_numbers<[1], [0], [0], [1], [0, 0, 1, 1], [], []>} : vector<8x8xf32>, vector<8x16xf32>, vector<8x16xf32> -> vector<8x16xf32>
    %37 = arith.addf %32, %36 : vector<8x16xf32>
    %38 = vector.extract_strided_slice %18 {offsets = [0, 12], sizes = [8, 16], strides = [1, 1]} : vector<8x34xf32> to vector<8x16xf32>
    %c4 = arith.constant 4 : index
    %c0_22 = arith.constant 0 : index
    %c0_23 = arith.constant 0 : index
    %39 = vector.load %arg4[%c4, %c0_22, %c0_23] : memref<7x8x8xf32, #tpu.memory_space<vmem>>, vector<1x8x8xf32>
    %40 = vector.shape_cast %39 : vector<1x8x8xf32> to vector<8x8xf32>
    %cst_24 = arith.constant dense<0.000000e+00> : vector<8x16xf32>
    %41 = tpu.matmul %40, %38, %cst_24 {dimension_numbers = #tpu.dot_dimension_numbers<[1], [0], [0], [1], [0, 0, 1, 1], [], []>} : vector<8x8xf32>, vector<8x16xf32>, vector<8x16xf32> -> vector<8x16xf32>
    %42 = arith.addf %37, %41 : vector<8x16xf32>
    %43 = vector.extract_strided_slice %18 {offsets = [0, 15], sizes = [8, 16], strides = [1, 1]} : vector<8x34xf32> to vector<8x16xf32>
    %c5 = arith.constant 5 : index
    %c0_25 = arith.constant 0 : index
    %c0_26 = arith.constant 0 : index
    %44 = vector.load %arg4[%c5, %c0_25, %c0_26] : memref<7x8x8xf32, #tpu.memory_space<vmem>>, vector<1x8x8xf32>
    %45 = vector.shape_cast %44 : vector<1x8x8xf32> to vector<8x8xf32>
    %cst_27 = arith.constant dense<0.000000e+00> : vector<8x16xf32>
    %46 = tpu.matmul %45, %43, %cst_27 {dimension_numbers = #tpu.dot_dimension_numbers<[1], [0], [0], [1], [0, 0, 1, 1], [], []>} : vector<8x8xf32>, vector<8x16xf32>, vector<8x16xf32> -> vector<8x16xf32>
    %47 = arith.addf %42, %46 : vector<8x16xf32>
    %48 = vector.extract_strided_slice %18 {offsets = [0, 18], sizes = [8, 16], strides = [1, 1]} : vector<8x34xf32> to vector<8x16xf32>
    %c6 = arith.constant 6 : index
    %c0_28 = arith.constant 0 : index
    %c0_29 = arith.constant 0 : index
    %49 = vector.load %arg4[%c6, %c0_28, %c0_29] : memref<7x8x8xf32, #tpu.memory_space<vmem>>, vector<1x8x8xf32>
    %50 = vector.shape_cast %49 : vector<1x8x8xf32> to vector<8x8xf32>
    %cst_30 = arith.constant dense<0.000000e+00> : vector<8x16xf32>
    %51 = tpu.matmul %50, %48, %cst_30 {dimension_numbers = #tpu.dot_dimension_numbers<[1], [0], [0], [1], [0, 0, 1, 1], [], []>} : vector<8x8xf32>, vector<8x16xf32>, vector<8x16xf32> -> vector<8x16xf32>
    %52 = arith.addf %47, %51 : vector<8x16xf32>
    %c0_31 = arith.constant 0 : index
    %c0_32 = arith.constant 0 : index
    %53 = vector.load %arg5[%c0_31, %c0_32] : memref<8x1xf32, #tpu.memory_space<vmem>>, vector<8x1xf32>
    %54 = vector.broadcast %53 : vector<8x1xf32> to vector<8x16xf32>
    %55 = arith.addf %52, %54 : vector<8x16xf32>
    %cst_33 = arith.constant 0.000000e+00 : f32
    %56 = vector.broadcast %cst_33 : f32 to vector<8x16xf32>
    %57 = arith.cmpf ogt, %55, %56 : vector<8x16xf32>
    %58 = math.exp %55 : vector<8x16xf32>
    %cst_34 = arith.constant 1.000000e+00 : f32
    %59 = vector.broadcast %cst_34 : f32 to vector<8x16xf32>
    %60 = arith.subf %58, %59 : vector<8x16xf32>
    %61 = arith.select %57, %55, %60 : vector<8x16xi1>, vector<8x16xf32>
    %c0_35 = arith.constant 0 : index
    %c0_36 = arith.constant 0 : index
    %62 = vector.load %arg6[%c0_35, %c0_36] : memref<8x8xf32, #tpu.memory_space<vmem>>, vector<8x8xf32>
    %cst_37 = arith.constant dense<0.000000e+00> : vector<8x16xf32>
    %63 = tpu.matmul %62, %61, %cst_37 {dimension_numbers = #tpu.dot_dimension_numbers<[1], [0], [0], [1], [0, 0, 1, 1], [], []>} : vector<8x8xf32>, vector<8x16xf32>, vector<8x16xf32> -> vector<8x16xf32>
    %c0_38 = arith.constant 0 : index
    %c0_39 = arith.constant 0 : index
    %64 = vector.load %arg7[%c0_38, %c0_39] : memref<8x1xf32, #tpu.memory_space<vmem>>, vector<8x1xf32>
    %65 = vector.broadcast %64 : vector<8x1xf32> to vector<8x16xf32>
    %66 = arith.addf %63, %65 : vector<8x16xf32>
    %67 = arith.addf %66, %1 : vector<8x16xf32>
    %c0_40 = arith.constant 0 : index
    %c0_41 = arith.constant 0 : index
    %c0_42 = arith.constant 0 : index
    %68 = vector.load %arg8[%c0_40, %c0_41, %c0_42] : memref<1x8x16xf32, #tpu.memory_space<vmem>>, vector<1x8x16xf32>
    %69 = vector.shape_cast %68 : vector<1x8x16xf32> to vector<8x16xf32>
    %70 = vector.shape_cast %67 : vector<8x16xf32> to vector<1x8x16xf32>
    tpu.vector_store %arg8[%c0_40, %c0_41, %c0_42], %70 {strides = array<i32>} : memref<1x8x16xf32, #tpu.memory_space<vmem>>, vector<1x8x16xf32>,
    return
  }
  func.func @transform_0(%arg0: i32, %arg1: i32) -> (i32, i32, i32) {
    %c0_i32 = arith.constant 0 : i32
    %c0_i32_0 = arith.constant 0 : i32
    return %arg0, %c0_i32, %arg1 : i32, i32, i32
  }
  func.func @transform_1(%arg0: i32, %arg1: i32) -> (i32, i32, i32, i32) {
    %c0_i32 = arith.constant 0 : i32
    %c0_i32_0 = arith.constant 0 : i32
    %c0_i32_1 = arith.constant 0 : i32
    return %arg0, %arg1, %c0_i32, %c0_i32_0 : i32, i32, i32, i32
  }
  func.func @transform_2(%arg0: i32, %arg1: i32) -> (i32, i32, i32) {
    %c0_i32 = arith.constant 0 : i32
    %c0_i32_0 = arith.constant 0 : i32
    %c0_i32_1 = arith.constant 0 : i32
    %c0_i32_2 = arith.constant 0 : i32
    return %c0_i32, %c0_i32_0, %c0_i32_1 : i32, i32, i32
  }
  func.func @transform_3(%arg0: i32, %arg1: i32) -> (i32, i32) {
    %c0_i32 = arith.constant 0 : i32
    %c0_i32_0 = arith.constant 0 : i32
    %c0_i32_1 = arith.constant 0 : i32
    return %c0_i32, %c0_i32_0 : i32, i32
  }
  func.func @transform_4(%arg0: i32, %arg1: i32) -> (i32, i32) {
    %c0_i32 = arith.constant 0 : i32
    %c0_i32_0 = arith.constant 0 : i32
    %c0_i32_1 = arith.constant 0 : i32
    return %c0_i32, %c0_i32_0 : i32, i32
  }
  func.func @transform_5(%arg0: i32, %arg1: i32) -> (i32, i32) {
    %c0_i32 = arith.constant 0 : i32
    %c0_i32_0 = arith.constant 0 : i32
    %c0_i32_1 = arith.constant 0 : i32
    return %c0_i32, %c0_i32_0 : i32, i32
  }
  func.func @transform_6(%arg0: i32, %arg1: i32) -> (i32, i32, i32) {
    %c0_i32 = arith.constant 0 : i32
    %c0_i32_0 = arith.constant 0 : i32
    return %arg0, %c0_i32, %arg1 : i32, i32, i32
  }
}

</mosaic_0001>

<llo_original>
// kernel: tpu_custom_call.1
$region0: #{tpu_custom_call.1}
  #allocation0 [shape = 'u32[]', space=smem, size = 0x4, offset = 0x4, fixed_abs, tag = 'smem constant byte address 0x4 - core index']
  #allocation1 [shape = 'u32[144,128]{1,0:T(1,128)}', space=vmem, size = 0x12000, scoped, tag = 'internal scratch']
  #allocation2 [shape = 'f32[8,16]{1,0:T(8,128)}', space=vmem, size = 0x1000, scoped, tag = 'scratch operand']
  %s0 = inlined_call_operand.vmem [shape: f32[2,8,16], index: 0, kind: input, shape index: {}]
  %s1 = inlined_call_operand.hbm [shape: f32[2,1,8,18], index: 1, kind: input, shape index: {}]
  %s2 = inlined_call_operand.hbm [shape: f32[7,8,8], index: 2, kind: input, shape index: {}]
  %s3 = inlined_call_operand.vmem [shape: f32[8,1], index: 3, kind: input, shape index: {}]
  %s4 = inlined_call_operand.vmem [shape: f32[8,8], index: 4, kind: input, shape index: {}]
  %s5 = inlined_call_operand.vmem [shape: f32[8,1], index: 5, kind: input, shape index: {}]
  %s6 = inlined_call_operand.hbm [shape: f32[2,8,16], index: 6, kind: output, shape index: {}]
  %s7 = sld [smem:[#allocation0]]
  $region65: #{tpu_custom_call.1} parent=0
    _
  %s9 = ssub.s32 1, %s7
  %s10 = scalar_select 0, %s9, %s7
  $region1: #{tpu_custom_call.1} parent=0
    #allocation3 [shape = 'u8[8192]{0}', space=vmem, size = 0x2000, scoped, tag = 'input window, operand 1']
    #allocation4 [shape = 's32[2]{0}', space=sflag, size = 0x8, scoped, tag = 'scoped memory for tpu_custom_call.1']
    #allocation5 [shape = 's32[2]{0}', space=sflag, size = 0x8, scoped, tag = 'scoped memory for tpu_custom_call.1']
    #allocation6 [shape = 'u8[28672]{0}', space=vmem, size = 0x7000, scoped, tag = 'input window, operand 2, single buffered']
    #allocation7 [shape = 's32[1]{0}', space=sflag, size = 0x4, scoped, tag = 'scoped memory for tpu_custom_call.1']
    #allocation8 [shape = 'u8[8192]{0}', space=vmem, size = 0x2000, scoped, tag = 'output window, operand 0']
    %11 = vsyncpa [#allocation4], 0
    %s12 = scalar_lea.sflag [#allocation4], 1
    %13 = vsyncpa %s12, 0
    %14 = vsyncpa [#allocation7], 0
    %15 = vsyncpa [#allocation5], 0
    %s16 = scalar_lea.sflag [#allocation5], 1
    %17 = vsyncpa %s16, 0
    loop: start=0, step=1, limit=4
    $region2: #{tpu_custom_call.1} parent=1 // loop_pre_header
      _
    $region3: #{tpu_custom_call.1} parent=1 // loop_header
      %s19 = sphi 0, %s23
      %p20 = scmp.ge.s32.totalorder %s19, 4
      %s26 = sphi 0, %s38
      %s27 = sphi 0, %s34
      %s28 = sphi 0, %s26
      %s29 = sphi 0, %s27
      %s30 = sphi 0, %s28
      %s31 = sphi 0, %s29
      %s43 = sphi 0, %s45
      %s46 = sphi 0, %s43
      %s47 = sphi 0, %s46
      %s63 = sphi 0, %s47
      %s71 = sphi 0, %s73
      %s74 = sphi 0, %s71
      %s75 = sphi 0, %s74
      %s91 = sphi 0, %s75
      %s95 = sphi 0, %s95
      %s97 = sphi 0, %s95
      %s98 = sphi 0, %s97
      %s112 = sphi 0, %s98
      %s116 = sphi 0, %s116
      %s118 = sphi 0, %s116
      %s119 = sphi 0, %s118
      %s133 = sphi 0, %s119
      %s137 = sphi 0, %s137
      %s139 = sphi 0, %s137
      %s140 = sphi 0, %s139
      %s154 = sphi 0, %s140
      %s158 = sphi 0, %s158
      %s160 = sphi 0, %s158
      %s161 = sphi 0, %s160
      %s175 = sphi 0, %s161
      %s183 = sphi 0, %s185
      %s186 = sphi 0, %s183
      %s187 = sphi 0, %s186
      %s203 = sphi 0, %s187
    $region4: #{tpu_custom_call.1} parent=1 // loop_header_branch
      %22 = sbr.rel (%p20) target = $region8
    $region5: #{tpu_custom_call.1} parent=1 // loop_body
      %s24 = ssub.s32 %s19, 1
      %s25 = ssub.s32 %s19, 2
      %s32 = sadd.s32 1, %s27
      %p33 = scmp.ge.s32.totalorder %s32, 1
      %s34 = scalar_select %p33, 0, %s32
      %s35 = sadd.s32 1, %s26
      %s36 = scalar_select %p33, %s35, %s26
      %p37 = scmp.ge.s32.totalorder %s36, 2
      %s38 = scalar_select %p37, 0, %s36
      %s39 = ssub.s32 %s26, %s38
      %s40 = ssub.s32 %s27, %s34
      %s41 = sor.u32 %s39, %s40
      %p42 = scmp.eq.s32.totalorder %s41, 0
      %s44 = sadd.s32 %s43, 1
      %s45 = scalar_select %p42, %s43, %s44
      %p48 = pneg %p42
      %p49 = scmp.eq.s32.totalorder %s19, 1
      %p50 = por %p48, %p49
      %p51 = scmp.ne.s32.totalorder %s43, %s46
      %p52 = scmp.eq.s32.totalorder %s19, 0
      %p53 = por %p51, %p52
      %p54 = scmp.ne.s32.totalorder %s43, %s46
      %p55 = scmp.eq.s32.totalorder %s24, 1
      %p56 = por %p54, %p55
      %p57 = scmp.ne.s32.totalorder %s46, %s47
      %p58 = scmp.eq.s32.totalorder %s24, 0
      %p59 = por %p57, %p58
      %p60 = scmp.ne.s32.totalorder %s46, %s47
      %p61 = scmp.eq.s32.totalorder %s25, 1
      %p62 = por %p60, %p61
      %p64 = scmp.ne.s32.totalorder %s47, %s63
      %p65 = scmp.eq.s32.totalorder %s25, 0
      %p66 = por %p64, %p65
      %s67 = ssub.s32 %s26, %s38
      %s68 = ssub.s32 %s27, %s34
      %s69 = sor.u32 %s67, %s68
      %p70 = scmp.eq.s32.totalorder %s69, 0
      %s72 = sadd.s32 %s71, 1
      %s73 = scalar_select %p70, %s71, %s72
      %p76 = pneg %p70
      %p77 = scmp.eq.s32.totalorder %s19, 1
      %p78 = por %p76, %p77
      %p79 = scmp.ne.s32.totalorder %s71, %s74
      %p80 = scmp.eq.s32.totalorder %s19, 0
      %p81 = por %p79, %p80
      %p82 = scmp.ne.s32.totalorder %s71, %s74
      %p83 = scmp.eq.s32.totalorder %s24, 1
      %p84 = por %p82, %p83
      %p85 = scmp.ne.s32.totalorder %s74, %s75
      %p86 = scmp.eq.s32.totalorder %s24, 0
      %p87 = por %p85, %p86
      %p88 = scmp.ne.s32.totalorder %s74, %s75
      %p89 = scmp.eq.s32.totalorder %s25, 1
      %p90 = por %p88, %p89
      %p92 = scmp.ne.s32.totalorder %s75, %s91
      %p93 = scmp.eq.s32.totalorder %s25, 0
      %p94 = por %p92, %p93
      %s96 = sadd.s32 %s95, 1
      %p99 = scmp.eq.s32.totalorder %s19, 1
      %p100 = scmp.ne.s32.totalorder %s95, %s97
      %p101 = scmp.eq.s32.totalorder %s19, 0
      %p102 = por %p100, %p101
      %p103 = scmp.ne.s32.totalorder %s95, %s97
      %p104 = scmp.eq.s32.totalorder %s24, 1
      %p105 = por %p103, %p104
      %p106 = scmp.ne.s32.totalorder %s97, %s98
      %p107 = scmp.eq.s32.totalorder %s24, 0
      %p108 = por %p106, %p107
      %p109 = scmp.ne.s32.totalorder %s97, %s98
      %p110 = scmp.eq.s32.totalorder %s25, 1
      %p111 = por %p109, %p110
      %p113 = scmp.ne.s32.totalorder %s98, %s112
      %p114 = scmp.eq.s32.totalorder %s25, 0
      %p115 = por %p113, %p114
      %s117 = sadd.s32 %s116, 1
      %p120 = scmp.eq.s32.totalorder %s19, 1
      %p121 = scmp.ne.s32.totalorder %s116, %s118
      %p122 = scmp.eq.s32.totalorder %s19, 0
      %p123 = por %p121, %p122
      %p124 = scmp.ne.s32.totalorder %s116, %s118
      %p125 = scmp.eq.s32.totalorder %s24, 1
      %p126 = por %p124, %p125
      %p127 = scmp.ne.s32.totalorder %s118, %s119
      %p128 = scmp.eq.s32.totalorder %s24, 0
      %p129 = por %p127, %p128
      %p130 = scmp.ne.s32.totalorder %s118, %s119
      %p131 = scmp.eq.s32.totalorder %s25, 1
      %p132 = por %p130, %p131
      %p134 = scmp.ne.s32.totalorder %s119, %s133
      %p135 = scmp.eq.s32.totalorder %s25, 0
      %p136 = por %p134, %p135
      %s138 = sadd.s32 %s137, 1
      %p141 = scmp.eq.s32.totalorder %s19, 1
      %p142 = scmp.ne.s32.totalorder %s137, %s139
      %p143 = scmp.eq.s32.totalorder %s19, 0
      %p144 = por %p142, %p143
      %p145 = scmp.ne.s32.totalorder %s137, %s139
      %p146 = scmp.eq.s32.totalorder %s24, 1
      %p147 = por %p145, %p146
      %p148 = scmp.ne.s32.totalorder %s139, %s140
      %p149 = scmp.eq.s32.totalorder %s24, 0
      %p150 = por %p148, %p149
      %p151 = scmp.ne.s32.totalorder %s139, %s140
      %p152 = scmp.eq.s32.totalorder %s25, 1
      %p153 = por %p151, %p152
      %p155 = scmp.ne.s32.totalorder %s140, %s154
      %p156 = scmp.eq.s32.totalorder %s25, 0
      %p157 = por %p155, %p156
      %s159 = sadd.s32 %s158, 1
      %p162 = scmp.eq.s32.totalorder %s19, 1
      %p163 = scmp.ne.s32.totalorder %s158, %s160
      %p164 = scmp.eq.s32.totalorder %s19, 0
      %p165 = por %p163, %p164
      %p166 = scmp.ne.s32.totalorder %s158, %s160
      %p167 = scmp.eq.s32.totalorder %s24, 1
      %p168 = por %p166, %p167
      %p169 = scmp.ne.s32.totalorder %s160, %s161
      %p170 = scmp.eq.s32.totalorder %s24, 0
      %p171 = por %p169, %p170
      %p172 = scmp.ne.s32.totalorder %s160, %s161
      %p173 = scmp.eq.s32.totalorder %s25, 1
      %p174 = por %p172, %p173
      %p176 = scmp.ne.s32.totalorder %s161, %s175
      %p177 = scmp.eq.s32.totalorder %s25, 0
      %p178 = por %p176, %p177
      %s179 = ssub.s32 %s26, %s38
      %s180 = ssub.s32 %s27, %s34
      %s181 = sor.u32 %s179, %s180
      %p182 = scmp.eq.s32.totalorder %s181, 0
      %s184 = sadd.s32 %s183, 1
      %s185 = scalar_select %p182, %s183, %s184
      %p188 = pneg %p182
      %p189 = scmp.eq.s32.totalorder %s19, 1
      %p190 = por %p188, %p189
      %p191 = scmp.ne.s32.totalorder %s183, %s186
      %p192 = scmp.eq.s32.totalorder %s19, 0
      %p193 = por %p191, %p192
      %p194 = scmp.ne.s32.totalorder %s183, %s186
      %p195 = scmp.eq.s32.totalorder %s24, 1
      %p196 = por %p194, %p195
      %p197 = scmp.ne.s32.totalorder %s186, %s187
      %p198 = scmp.eq.s32.totalorder %s24, 0
      %p199 = por %p197, %p198
      %p200 = scmp.ne.s32.totalorder %s186, %s187
      %p201 = scmp.eq.s32.totalorder %s25, 1
      %p202 = por %p200, %p201
      %p204 = scmp.ne.s32.totalorder %s187, %s203
      %p205 = scmp.eq.s32.totalorder %s25, 0
      %p206 = por %p204, %p205
      %p207 = scmp.le.s32.totalorder 1, %s19
      %p208 = scmp.lt.s32.totalorder %s19, 3
      %p209 = pnand %p207, %p208
      %p210 = pneg %p209
      // Predicated region
      $region9: #{tpu_custom_call.1} parent=5 // pred_check
        _
      $region10: #{tpu_custom_call.1} parent=5 // pred_check_branch
        %212 = sbr.rel (%p209) target = $region12
      $region11: #{tpu_custom_call.1} parent=5 // pred_region
        %s213 = ssub.s32 %s19, 1
        // Predicated region
        $region13: #{tpu_custom_call.1} parent=11 // pred_check
          %p214 = pneg %p108
        $region14: #{tpu_custom_call.1} parent=11 // pred_check_branch
          %216 = sbr.rel (%p214) target = $region16
        $region15: #{tpu_custom_call.1} parent=11 // pred_region
          %s218 = ssub.s32 896, 896
          %219 = vsyncadd [#allocation7], %s218
          %s220 = sshll.u32 [#allocation6], 4
          %s221 = int_to_ptr.vmem [resolvable:$true] %s220
          %226 = dma.hbm_to_vmem [thread:$0]  %s2, 896, %s221, [#allocation7], 128, 128, 8
        $region16: #{tpu_custom_call.1} parent=11 // pred_fallthru
          _
        // Predicated region
        $region17: #{tpu_custom_call.1} parent=11 // pred_check
          %p227 = pneg %p129
        $region18: #{tpu_custom_call.1} parent=11 // pred_check_branch
          %229 = sbr.rel (%p227) target = $region20
        $region19: #{tpu_custom_call.1} parent=11 // pred_region
          _
        $region20: #{tpu_custom_call.1} parent=11 // pred_fallthru
          _
        // Predicated region
        $region21: #{tpu_custom_call.1} parent=11 // pred_check
          %p230 = pneg %p150
        $region22: #{tpu_custom_call.1} parent=11 // pred_check_branch
          %232 = sbr.rel (%p230) target = $region24
        $region23: #{tpu_custom_call.1} parent=11 // pred_region
          _
        $region24: #{tpu_custom_call.1} parent=11 // pred_fallthru
          _
        // Predicated region
        $region25: #{tpu_custom_call.1} parent=11 // pred_check
          %p233 = pneg %p171
        $region26: #{tpu_custom_call.1} parent=11 // pred_check_branch
          %235 = sbr.rel (%p233) target = $region28
        $region27: #{tpu_custom_call.1} parent=11 // pred_region
          _
        $region28: #{tpu_custom_call.1} parent=11 // pred_fallthru
          _
      $region12: #{tpu_custom_call.1} parent=5 // pred_fallthru
        _
      %p236 = scmp.lt.s32.totalorder %s19, 2
      // Predicated region
      $region29: #{tpu_custom_call.1} parent=5 // pred_check
        %p237 = pneg %p236
      $region30: #{tpu_custom_call.1} parent=5 // pred_check_branch
        %239 = sbr.rel (%p237) target = $region32
      $region31: #{tpu_custom_call.1} parent=5 // pred_region
        // Predicated region
        $region33: #{tpu_custom_call.1} parent=31 // pred_check
          %p240 = pneg %p53
        $region34: #{tpu_custom_call.1} parent=31 // pred_check_branch
          %242 = sbr.rel (%p240) target = $region36
        $region35: #{tpu_custom_call.1} parent=31 // pred_region
          %p243 = scmp.lt.s32.totalorder %s26, 1
          %s244 = scalar_select %p243, %s26, 1
          %p245 = scmp.lt.s32.totalorder %s27, 0
          %s246 = scalar_select %p245, %s27, 0
          %s247 = sadd.s32 %s246, %s244
          %s248 = smul.addr %s247, 8
          %s249 = scalar_lea.vmem %s0, %s248
        $region36: #{tpu_custom_call.1} parent=31 // pred_fallthru
          _
        // Predicated region
        $region37: #{tpu_custom_call.1} parent=31 // pred_check
          %p250 = pneg %p81
        $region38: #{tpu_custom_call.1} parent=31 // pred_check_branch
          %252 = sbr.rel (%p250) target = $region40
        $region39: #{tpu_custom_call.1} parent=31 // pred_region
          %s253 = sand.u32 %s71, 1
          %s254 = scalar_lea.sflag [#allocation4], %s253
          %s255 = sand.u32 %s71, 1
          %s256 = smul.addr %s255, 8
          %s257 = scalar_lea.vmem [#allocation3], %s256
          %s259 = ssub.s32 128, 128
          %260 = vsyncadd %s254, %s259
          %s261 = sadd.s32 %s27, %s26
          %s262 = smul.addr %s261, 128
          %s263 = scalar_lea.hbm %s1, %s262
          %s265 = sshll.u32 %s257, 4
          %s266 = int_to_ptr.vmem [resolvable:$true] %s265
          %268 = dma.hbm_to_vmem [thread:$0]  %s263, 128, %s266, %s254
        $region40: #{tpu_custom_call.1} parent=31 // pred_fallthru
          _
      $region32: #{tpu_custom_call.1} parent=5 // pred_fallthru
        _
      %p269 = scmp.le.s32.totalorder 1, %s19
      %p270 = scmp.lt.s32.totalorder %s19, 3
      %p271 = pnand %p269, %p270
      %p272 = pneg %p271
      // Predicated region
      $region41: #{tpu_custom_call.1} parent=5 // pred_check
        _
      $region42: #{tpu_custom_call.1} parent=5 // pred_check_branch
        %274 = sbr.rel (%p271) target = $region44
      $region43: #{tpu_custom_call.1} parent=5 // pred_region
        %s275 = ssub.s32 %s19, 1
        %s276 = sand.u32 %s74, 1
        %s277 = scalar_lea.sflag [#allocation4], %s276
        %s278 = sand.u32 %s74, 1
        %s279 = smul.addr %s278, 8
        %s280 = scalar_lea.vmem [#allocation3], %s279
        // Predicated region
        $region45: #{tpu_custom_call.1} parent=43 // pred_check
          %p281 = pneg %p87
        $region46: #{tpu_custom_call.1} parent=43 // pred_check_branch
          %283 = sbr.rel (%p281) target = $region48
        $region47: #{tpu_custom_call.1} parent=43 // pred_region
          %284 = dma.done %s277, 128
        $region48: #{tpu_custom_call.1} parent=43 // pred_fallthru
          _
        // Predicated region
        $region49: #{tpu_custom_call.1} parent=43 // pred_check
          %p285 = pneg %p108
        $region50: #{tpu_custom_call.1} parent=43 // pred_check_branch
          %287 = sbr.rel (%p285) target = $region52
        $region51: #{tpu_custom_call.1} parent=43 // pred_region
          %288 = dma.done [#allocation7], 896
        $region52: #{tpu_custom_call.1} parent=43 // pred_fallthru
          _
        %p289 = scmp.lt.s32.totalorder %s28, 1
        %s290 = scalar_select %p289, %s28, 1
        %p291 = scmp.lt.s32.totalorder %s29, 0
        %s292 = scalar_select %p291, %s29, 0
        %s293 = sadd.s32 %s292, %s290
        %s294 = smul.addr %s293, 8
        %s295 = scalar_lea.vmem %s0, %s294
        %p296 = pneg %p59
        %p297 = pneg %p56
        %s298 = sand.u32 %s74, 1
        %s299 = scalar_lea.sflag [#allocation4], %s298
        %s300 = sand.u32 %s74, 1
        %s301 = smul.addr %s300, 8
        %s302 = scalar_lea.vmem [#allocation3], %s301
        %p303 = pneg %p87
        %p304 = pneg %p84
        %p305 = pneg %p108
        %p306 = pneg %p105
        %p307 = pneg %p129
        %p308 = pneg %p126
        %p309 = pneg %p150
        %p310 = pneg %p147
        %p311 = pneg %p171
        %p312 = pneg %p168
        %p313 = pneg %p199
        %p314 = pneg %p196
        %s315 = sand.u32 %s186, 1
        %s316 = scalar_lea.sflag [#allocation5], %s315
        %s317 = sand.u32 %s186, 1
        %s318 = smul.addr %s317, 8
        %s319 = scalar_lea.vmem [#allocation8], %s318
        %p320 = scmp.lt.s32.totalorder %s28, 1
        %s321 = scalar_select %p320, %s28, 1
        %p322 = scmp.lt.s32.totalorder %s29, 0
        %s323 = scalar_select %p322, %s29, 0
        %s324 = sadd.s32 %s323, %s321
        %s325 = smul.addr %s324, 8
        %s326 = scalar_lea.vmem %s0, %s325
        %v327 = vld [vmem:[%s326] sm:$0xff]
        %vm328 = vcmp.gt.f32.partialorder %v327, 0.0
        %v329 = vmul.f32 %v327, 1.442695
        %v330 = vpow.pop %v329
        %v331 = vsub.f32 %v330, 1.0
        %v332 = vsel %vm328, %v327, %v331
        %v333 = vld [vmem:[%s280] sm:$0xff]
        %vm334 = vcmp.gt.f32.partialorder %v333, 0.0
        %v335 = vmul.f32 %v333, 1.442695
        %v336 = vpow.pop %v335
        %v337 = vsub.f32 %v336, 1.0
        %v338 = vsel %vm334, %v333, %v337
        %340 = vrot.lane.b32.xlu0 %v332, 9
        %v341 = vpop.permute.xlu0 %340
        %344 = vrot.lane.b32.xlu0 %v338, 16
        %v345 = vpop.permute.xlu0 %344
        %vm347 = vcmask 72704
        %v348 = vsel %vm347, %v338, %v341
        %vm349 = vcmask 203776
        %v350 = vsel %vm349, %v348, %v345
        %v351 = vld [vmem:[#allocation6] sm:$0xff]
        %s352 = scalar_lea.vmem [#allocation6], 8
        %v353 = vld [vmem:[%s352] sm:$0xff]
        %355 = vrot.lane.b32.xlu0 %v350, 125
        %v356 = vpop.permute.xlu0 %355
        %vm358 = vcmask 64512
        %v360 = vsel %vm358, %v353, 0
        %362 = vmatprep.subr.mxu0 0.0
        %363 = vmatpush1.msra.mxu0 %v356
        %364 = vmatprep.subr.mxu0 0.0
        %365 = vmatpush1.msra.mxu0 0.0
        %366 = vmatprep.subr.mxu0 0.0
        %367 = vmatpush1.msra.mxu0 0.0
        %368 = vmatprep.subr.mxu0 0.0
        %369 = vmatpush1.msra.mxu0 0.0
        %370 = vmatprep.subr.mxu0 0.0
        %371 = vmatpush1.msra.mxu0 0.0
        %372 = vmatprep.subr.mxu0 0.0
        %373 = vmatpush1.msra.mxu0 0.0
        %374 = vmatprep.subr.mxu0 0.0
        %375 = vmatpush1.msra.mxu0 0.0
        %376 = vmatprep.subr.mxu0 0.0
        %377 = vmatpush1.msra.mxu0 0.0
        %378 = vmatprep.subr.mxu0 0.0
        %379 = vmatpush1.msra.mxu0 0.0
        %380 = vmatprep.subr.mxu0 0.0
        %381 = vmatpush1.msra.mxu0 0.0
        %382 = vmatprep.subr.mxu0 0.0
        %383 = vmatpush1.msra.mxu0 0.0
        %384 = vmatprep.subr.mxu0 0.0
        %385 = vmatpush1.msra.mxu0 0.0
        %386 = vmatprep.subr.mxu0 0.0
        %387 = vmatpush1.msra.mxu0 0.0
        %388 = vmatprep.subr.mxu0 0.0
        %389 = vmatpush1.msra.mxu0 0.0
        %390 = vmatprep.subr.mxu0 0.0
        %391 = vmatpush1.msra.mxu0 0.0
        %392 = vmatprep.subr.mxu0 0.0
        %393 = vmatpush1.msra.mxu0 0.0
        %394 = vmatprep.subr.mxu0 0.0
        %395 = vmatpush1.msra.mxu0 0.0
        %396 = vmatprep.subr.mxu0 0.0
        %397 = vmatpush1.msra.mxu0 0.0
        %398 = vmatprep.subr.mxu0 0.0
        %399 = vmatpush1.msra.mxu0 0.0
        %400 = vmatprep.subr.mxu0 0.0
        %401 = vmatpush1.msra.mxu0 0.0
        %402 = vmatprep.subr.mxu0 0.0
        %403 = vmatpush1.msra.mxu0 0.0
        %404 = vmatprep.subr.mxu0 0.0
        %405 = vmatpush1.msra.mxu0 0.0
        %406 = vmatprep.subr.mxu0 0.0
        %407 = vmatpush1.msra.mxu0 0.0
        %408 = vmatprep.subr.mxu0 0.0
        %409 = vmatpush1.msra.mxu0 0.0
        %410 = vmatprep.subr.mxu0 0.0
        %411 = vmatpush1.msra.mxu0 0.0
        %412 = vmatprep.subr.mxu0 0.0
        %413 = vmatpush1.msra.mxu0 0.0
        %414 = vmatprep.subr.mxu0 0.0
        %415 = vmatpush1.msra.mxu0 0.0
        %416 = vmatprep.subr.mxu0 0.0
        %417 = vmatpush1.msra.mxu0 0.0
        %418 = vmatprep.subr.mxu0 0.0
        %419 = vmatpush1.msra.mxu0 0.0
        %420 = vmatprep.subr.mxu0 0.0
        %421 = vmatpush1.msra.mxu0 0.0
        %422 = vmatprep.subr.mxu0 0.0
        %423 = vmatpush1.msra.mxu0 0.0
        %424 = vmatprep.subr.mxu0 0.0
        %425 = vmatpush1.msra.mxu0 0.0
        %426 = vmatprep.mubr.f32.mxu0 0.0
        %427 = vmatmul.mubr.f32.gmra.mrb[0].mxu0 %v360
        %v428 = vpop.f32.mrb[0].mxu0
        %v429 = vadd.f32 0.0, %v428
        %v430 = vpop.f32.mrb[0].mxu0
        %431 = vdwg.mxu0
        %v433 = vsel %vm358, %v351, 0
        %435 = vmatprep.subr.mxu0 0.0
        %436 = vmatpush1.msra.mxu0 %v350
        %437 = vmatprep.subr.mxu0 0.0
        %438 = vmatpush1.msra.mxu0 0.0
        %439 = vmatprep.subr.mxu0 0.0
        %440 = vmatpush1.msra.mxu0 0.0
        %441 = vmatprep.subr.mxu0 0.0
        %442 = vmatpush1.msra.mxu0 0.0
        %443 = vmatprep.subr.mxu0 0.0
        %444 = vmatpush1.msra.mxu0 0.0
        %445 = vmatprep.subr.mxu0 0.0
        %446 = vmatpush1.msra.mxu0 0.0
        %447 = vmatprep.subr.mxu0 0.0
        %448 = vmatpush1.msra.mxu0 0.0
        %449 = vmatprep.subr.mxu0 0.0
        %450 = vmatpush1.msra.mxu0 0.0
        %451 = vmatprep.subr.mxu0 0.0
        %452 = vmatpush1.msra.mxu0 0.0
        %453 = vmatprep.subr.mxu0 0.0
        %454 = vmatpush1.msra.mxu0 0.0
        %455 = vmatprep.subr.mxu0 0.0
        %456 = vmatpush1.msra.mxu0 0.0
        %457 = vmatprep.subr.mxu0 0.0
        %458 = vmatpush1.msra.mxu0 0.0
        %459 = vmatprep.subr.mxu0 0.0
        %460 = vmatpush1.msra.mxu0 0.0
        %461 = vmatprep.subr.mxu0 0.0
        %462 = vmatpush1.msra.mxu0 0.0
        %463 = vmatprep.subr.mxu0 0.0
        %464 = vmatpush1.msra.mxu0 0.0
        %465 = vmatprep.subr.mxu0 0.0
        %466 = vmatpush1.msra.mxu0 0.0
        %467 = vmatprep.subr.mxu0 0.0
        %468 = vmatpush1.msra.mxu0 0.0
        %469 = vmatprep.subr.mxu0 0.0
        %470 = vmatpush1.msra.mxu0 0.0
        %471 = vmatprep.subr.mxu0 0.0
        %472 = vmatpush1.msra.mxu0 0.0
        %473 = vmatprep.subr.mxu0 0.0
        %474 = vmatpush1.msra.mxu0 0.0
        %475 = vmatprep.subr.mxu0 0.0
        %476 = vmatpush1.msra.mxu0 0.0
        %477 = vmatprep.subr.mxu0 0.0
        %478 = vmatpush1.msra.mxu0 0.0
        %479 = vmatprep.subr.mxu0 0.0
        %480 = vmatpush1.msra.mxu0 0.0
        %481 = vmatprep.subr.mxu0 0.0
        %482 = vmatpush1.msra.mxu0 0.0
        %483 = vmatprep.subr.mxu0 0.0
        %484 = vmatpush1.msra.mxu0 0.0
        %485 = vmatprep.subr.mxu0 0.0
        %486 = vmatpush1.msra.mxu0 0.0
        %487 = vmatprep.subr.mxu0 0.0
        %488 = vmatpush1.msra.mxu0 0.0
        %489 = vmatprep.subr.mxu0 0.0
        %490 = vmatpush1.msra.mxu0 0.0
        %491 = vmatprep.subr.mxu0 0.0
        %492 = vmatpush1.msra.mxu0 0.0
        %493 = vmatprep.subr.mxu0 0.0
        %494 = vmatpush1.msra.mxu0 0.0
        %495 = vmatprep.subr.mxu0 0.0
        %496 = vmatpush1.msra.mxu0 0.0
        %497 = vmatprep.subr.mxu0 0.0
        %498 = vmatpush1.msra.mxu0 0.0
        %499 = vmatprep.mubr.f32.mxu0 0.0
        %500 = vmatmul.mubr.f32.gmra.mrb[0].mxu0 %v433
        %v501 = vpop.f32.mrb[0].mxu0
        %v502 = vadd.f32 %v429, %v501
        %v503 = vpop.f32.mrb[0].mxu0
        %504 = vdwg.mxu0
        %s505 = scalar_lea.vmem [#allocation6], 16
        %v506 = vld [vmem:[%s505] sm:$0xff]
        %507 = vrot.lane.b32.xlu0 %v350, 122
        %v508 = vpop.permute.xlu0 %507
        %v511 = vsel %vm358, %v506, 0
        %513 = vmatprep.subr.mxu0 0.0
        %514 = vmatpush1.msra.mxu0 %v508
        %515 = vmatprep.subr.mxu0 0.0
        %516 = vmatpush1.msra.mxu0 0.0
        %517 = vmatprep.subr.mxu0 0.0
        %518 = vmatpush1.msra.mxu0 0.0
        %519 = vmatprep.subr.mxu0 0.0
        %520 = vmatpush1.msra.mxu0 0.0
        %521 = vmatprep.subr.mxu0 0.0
        %522 = vmatpush1.msra.mxu0 0.0
        %523 = vmatprep.subr.mxu0 0.0
        %524 = vmatpush1.msra.mxu0 0.0
        %525 = vmatprep.subr.mxu0 0.0
        %526 = vmatpush1.msra.mxu0 0.0
        %527 = vmatprep.subr.mxu0 0.0
        %528 = vmatpush1.msra.mxu0 0.0
        %529 = vmatprep.subr.mxu0 0.0
        %530 = vmatpush1.msra.mxu0 0.0
        %531 = vmatprep.subr.mxu0 0.0
        %532 = vmatpush1.msra.mxu0 0.0
        %533 = vmatprep.subr.mxu0 0.0
        %534 = vmatpush1.msra.mxu0 0.0
        %535 = vmatprep.subr.mxu0 0.0
        %536 = vmatpush1.msra.mxu0 0.0
        %537 = vmatprep.subr.mxu0 0.0
        %538 = vmatpush1.msra.mxu0 0.0
        %539 = vmatprep.subr.mxu0 0.0
        %540 = vmatpush1.msra.mxu0 0.0
        %541 = vmatprep.subr.mxu0 0.0
        %542 = vmatpush1.msra.mxu0 0.0
        %543 = vmatprep.subr.mxu0 0.0
        %544 = vmatpush1.msra.mxu0 0.0
        %545 = vmatprep.subr.mxu0 0.0
        %546 = vmatpush1.msra.mxu0 0.0
        %547 = vmatprep.subr.mxu0 0.0
        %548 = vmatpush1.msra.mxu0 0.0
        %549 = vmatprep.subr.mxu0 0.0
        %550 = vmatpush1.msra.mxu0 0.0
        %551 = vmatprep.subr.mxu0 0.0
        %552 = vmatpush1.msra.mxu0 0.0
        %553 = vmatprep.subr.mxu0 0.0
        %554 = vmatpush1.msra.mxu0 0.0
        %555 = vmatprep.subr.mxu0 0.0
        %556 = vmatpush1.msra.mxu0 0.0
        %557 = vmatprep.subr.mxu0 0.0
        %558 = vmatpush1.msra.mxu0 0.0
        %559 = vmatprep.subr.mxu0 0.0
        %560 = vmatpush1.msra.mxu0 0.0
        %561 = vmatprep.subr.mxu0 0.0
        %562 = vmatpush1.msra.mxu0 0.0
        %563 = vmatprep.subr.mxu0 0.0
        %564 = vmatpush1.msra.mxu0 0.0
        %565 = vmatprep.subr.mxu0 0.0
        %566 = vmatpush1.msra.mxu0 0.0
        %567 = vmatprep.subr.mxu0 0.0
        %568 = vmatpush1.msra.mxu0 0.0
        %569 = vmatprep.subr.mxu0 0.0
        %570 = vmatpush1.msra.mxu0 0.0
        %571 = vmatprep.subr.mxu0 0.0
        %572 = vmatpush1.msra.mxu0 0.0
        %573 = vmatprep.subr.mxu0 0.0
        %574 = vmatpush1.msra.mxu0 0.0
        %575 = vmatprep.subr.mxu0 0.0
        %576 = vmatpush1.msra.mxu0 0.0
        %577 = vmatprep.mubr.f32.mxu0 0.0
        %578 = vmatmul.mubr.f32.gmra.mrb[0].mxu0 %v511
        %v579 = vpop.f32.mrb[0].mxu0
        %v580 = vadd.f32 0.0, %v579
        %v581 = vpop.f32.mrb[0].mxu0
        %582 = vdwg.mxu0
        %v583 = vadd.f32 %v502, %v580
        %s584 = scalar_lea.vmem [#allocation6], 24
        %v585 = vld [vmem:[%s584] sm:$0xff]
        %586 = vrot.lane.b32.xlu0 %v350, 119
        %v587 = vpop.permute.xlu0 %586
        %v590 = vsel %vm358, %v585, 0
        %592 = vmatprep.subr.mxu0 0.0
        %593 = vmatpush1.msra.mxu0 %v587
        %594 = vmatprep.subr.mxu0 0.0
        %595 = vmatpush1.msra.mxu0 0.0
        %596 = vmatprep.subr.mxu0 0.0
        %597 = vmatpush1.msra.mxu0 0.0
        %598 = vmatprep.subr.mxu0 0.0
        %599 = vmatpush1.msra.mxu0 0.0
        %600 = vmatprep.subr.mxu0 0.0
        %601 = vmatpush1.msra.mxu0 0.0
        %602 = vmatprep.subr.mxu0 0.0
        %603 = vmatpush1.msra.mxu0 0.0
        %604 = vmatprep.subr.mxu0 0.0
        %605 = vmatpush1.msra.mxu0 0.0
        %606 = vmatprep.subr.mxu0 0.0
        %607 = vmatpush1.msra.mxu0 0.0
        %608 = vmatprep.subr.mxu0 0.0
        %609 = vmatpush1.msra.mxu0 0.0
        %610 = vmatprep.subr.mxu0 0.0
        %611 = vmatpush1.msra.mxu0 0.0
        %612 = vmatprep.subr.mxu0 0.0
        %613 = vmatpush1.msra.mxu0 0.0
        %614 = vmatprep.subr.mxu0 0.0
        %615 = vmatpush1.msra.mxu0 0.0
        %616 = vmatprep.subr.mxu0 0.0
        %617 = vmatpush1.msra.mxu0 0.0
        %618 = vmatprep.subr.mxu0 0.0
        %619 = vmatpush1.msra.mxu0 0.0
        %620 = vmatprep.subr.mxu0 0.0
        %621 = vmatpush1.msra.mxu0 0.0
        %622 = vmatprep.subr.mxu0 0.0
        %623 = vmatpush1.msra.mxu0 0.0
        %624 = vmatprep.subr.mxu0 0.0
        %625 = vmatpush1.msra.mxu0 0.0
        %626 = vmatprep.subr.mxu0 0.0
        %627 = vmatpush1.msra.mxu0 0.0
        %628 = vmatprep.subr.mxu0 0.0
        %629 = vmatpush1.msra.mxu0 0.0
        %630 = vmatprep.subr.mxu0 0.0
        %631 = vmatpush1.msra.mxu0 0.0
        %632 = vmatprep.subr.mxu0 0.0
        %633 = vmatpush1.msra.mxu0 0.0
        %634 = vmatprep.subr.mxu0 0.0
        %635 = vmatpush1.msra.mxu0 0.0
        %636 = vmatprep.subr.mxu0 0.0
        %637 = vmatpush1.msra.mxu0 0.0
        %638 = vmatprep.subr.mxu0 0.0
        %639 = vmatpush1.msra.mxu0 0.0
        %640 = vmatprep.subr.mxu0 0.0
        %641 = vmatpush1.msra.mxu0 0.0
        %642 = vmatprep.subr.mxu0 0.0
        %643 = vmatpush1.msra.mxu0 0.0
        %644 = vmatprep.subr.mxu0 0.0
        %645 = vmatpush1.msra.mxu0 0.0
        %646 = vmatprep.subr.mxu0 0.0
        %647 = vmatpush1.msra.mxu0 0.0
        %648 = vmatprep.subr.mxu0 0.0
        %649 = vmatpush1.msra.mxu0 0.0
        %650 = vmatprep.subr.mxu0 0.0
        %651 = vmatpush1.msra.mxu0 0.0
        %652 = vmatprep.subr.mxu0 0.0
        %653 = vmatpush1.msra.mxu0 0.0
        %654 = vmatprep.subr.mxu0 0.0
        %655 = vmatpush1.msra.mxu0 0.0
        %656 = vmatprep.mubr.f32.mxu0 0.0
        %657 = vmatmul.mubr.f32.gmra.mrb[0].mxu0 %v590
        %v658 = vpop.f32.mrb[0].mxu0
        %v659 = vadd.f32 0.0, %v658
        %v660 = vpop.f32.mrb[0].mxu0
        %661 = vdwg.mxu0
        %v662 = vadd.f32 %v583, %v659
        %s663 = scalar_lea.vmem [#allocation6], 32
        %v664 = vld [vmem:[%s663] sm:$0xff]
        %665 = vrot.lane.b32.xlu0 %v350, 116
        %v666 = vpop.permute.xlu0 %665
        %v669 = vsel %vm358, %v664, 0
        %671 = vmatprep.subr.mxu0 0.0
        %672 = vmatpush1.msra.mxu0 %v666
        %673 = vmatprep.subr.mxu0 0.0
        %674 = vmatpush1.msra.mxu0 0.0
        %675 = vmatprep.subr.mxu0 0.0
        %676 = vmatpush1.msra.mxu0 0.0
        %677 = vmatprep.subr.mxu0 0.0
        %678 = vmatpush1.msra.mxu0 0.0
        %679 = vmatprep.subr.mxu0 0.0
        %680 = vmatpush1.msra.mxu0 0.0
        %681 = vmatprep.subr.mxu0 0.0
        %682 = vmatpush1.msra.mxu0 0.0
        %683 = vmatprep.subr.mxu0 0.0
        %684 = vmatpush1.msra.mxu0 0.0
        %685 = vmatprep.subr.mxu0 0.0
        %686 = vmatpush1.msra.mxu0 0.0
        %687 = vmatprep.subr.mxu0 0.0
        %688 = vmatpush1.msra.mxu0 0.0
        %689 = vmatprep.subr.mxu0 0.0
        %690 = vmatpush1.msra.mxu0 0.0
        %691 = vmatprep.subr.mxu0 0.0
        %692 = vmatpush1.msra.mxu0 0.0
        %693 = vmatprep.subr.mxu0 0.0
        %694 = vmatpush1.msra.mxu0 0.0
        %695 = vmatprep.subr.mxu0 0.0
        %696 = vmatpush1.msra.mxu0 0.0
        %697 = vmatprep.subr.mxu0 0.0
        %698 = vmatpush1.msra.mxu0 0.0
        %699 = vmatprep.subr.mxu0 0.0
        %700 = vmatpush1.msra.mxu0 0.0
        %701 = vmatprep.subr.mxu0 0.0
        %702 = vmatpush1.msra.mxu0 0.0
        %703 = vmatprep.subr.mxu0 0.0
        %704 = vmatpush1.msra.mxu0 0.0
        %705 = vmatprep.subr.mxu0 0.0
        %706 = vmatpush1.msra.mxu0 0.0
        %707 = vmatprep.subr.mxu0 0.0
        %708 = vmatpush1.msra.mxu0 0.0
        %709 = vmatprep.subr.mxu0 0.0
        %710 = vmatpush1.msra.mxu0 0.0
        %711 = vmatprep.subr.mxu0 0.0
        %712 = vmatpush1.msra.mxu0 0.0
        %713 = vmatprep.subr.mxu0 0.0
        %714 = vmatpush1.msra.mxu0 0.0
        %715 = vmatprep.subr.mxu0 0.0
        %716 = vmatpush1.msra.mxu0 0.0
        %717 = vmatprep.subr.mxu0 0.0
        %718 = vmatpush1.msra.mxu0 0.0
        %719 = vmatprep.subr.mxu0 0.0
        %720 = vmatpush1.msra.mxu0 0.0
        %721 = vmatprep.subr.mxu0 0.0
        %722 = vmatpush1.msra.mxu0 0.0
        %723 = vmatprep.subr.mxu0 0.0
        %724 = vmatpush1.msra.mxu0 0.0
        %725 = vmatprep.subr.mxu0 0.0
        %726 = vmatpush1.msra.mxu0 0.0
        %727 = vmatprep.subr.mxu0 0.0
        %728 = vmatpush1.msra.mxu0 0.0
        %729 = vmatprep.subr.mxu0 0.0
        %730 = vmatpush1.msra.mxu0 0.0
        %731 = vmatprep.subr.mxu0 0.0
        %732 = vmatpush1.msra.mxu0 0.0
        %733 = vmatprep.subr.mxu0 0.0
        %734 = vmatpush1.msra.mxu0 0.0
        %735 = vmatprep.mubr.f32.mxu0 0.0
        %736 = vmatmul.mubr.f32.gmra.mrb[0].mxu0 %v669
        %v737 = vpop.f32.mrb[0].mxu0
        %v738 = vadd.f32 0.0, %v737
        %v739 = vpop.f32.mrb[0].mxu0
        %740 = vdwg.mxu0
        %v741 = vadd.f32 %v662, %v738
        %s742 = scalar_lea.vmem [#allocation6], 40
        %v743 = vld [vmem:[%s742] sm:$0xff]
        %744 = vrot.lane.b32.xlu0 %v350, 113
        %v745 = vpop.permute.xlu0 %744
        %v748 = vsel %vm358, %v743, 0
        %750 = vmatprep.subr.mxu0 0.0
        %751 = vmatpush1.msra.mxu0 %v745
        %752 = vmatprep.subr.mxu0 0.0
        %753 = vmatpush1.msra.mxu0 0.0
        %754 = vmatprep.subr.mxu0 0.0
        %755 = vmatpush1.msra.mxu0 0.0
        %756 = vmatprep.subr.mxu0 0.0
        %757 = vmatpush1.msra.mxu0 0.0
        %758 = vmatprep.subr.mxu0 0.0
        %759 = vmatpush1.msra.mxu0 0.0
        %760 = vmatprep.subr.mxu0 0.0
        %761 = vmatpush1.msra.mxu0 0.0
        %762 = vmatprep.subr.mxu0 0.0
        %763 = vmatpush1.msra.mxu0 0.0
        %764 = vmatprep.subr.mxu0 0.0
        %765 = vmatpush1.msra.mxu0 0.0
        %766 = vmatprep.subr.mxu0 0.0
        %767 = vmatpush1.msra.mxu0 0.0
        %768 = vmatprep.subr.mxu0 0.0
        %769 = vmatpush1.msra.mxu0 0.0
        %770 = vmatprep.subr.mxu0 0.0
        %771 = vmatpush1.msra.mxu0 0.0
        %772 = vmatprep.subr.mxu0 0.0
        %773 = vmatpush1.msra.mxu0 0.0
        %774 = vmatprep.subr.mxu0 0.0
        %775 = vmatpush1.msra.mxu0 0.0
        %776 = vmatprep.subr.mxu0 0.0
        %777 = vmatpush1.msra.mxu0 0.0
        %778 = vmatprep.subr.mxu0 0.0
        %779 = vmatpush1.msra.mxu0 0.0
        %780 = vmatprep.subr.mxu0 0.0
        %781 = vmatpush1.msra.mxu0 0.0
        %782 = vmatprep.subr.mxu0 0.0
        %783 = vmatpush1.msra.mxu0 0.0
        %784 = vmatprep.subr.mxu0 0.0
        %785 = vmatpush1.msra.mxu0 0.0
        %786 = vmatprep.subr.mxu0 0.0
        %787 = vmatpush1.msra.mxu0 0.0
        %788 = vmatprep.subr.mxu0 0.0
        %789 = vmatpush1.msra.mxu0 0.0
        %790 = vmatprep.subr.mxu0 0.0
        %791 = vmatpush1.msra.mxu0 0.0
        %792 = vmatprep.subr.mxu0 0.0
        %793 = vmatpush1.msra.mxu0 0.0
        %794 = vmatprep.subr.mxu0 0.0
        %795 = vmatpush1.msra.mxu0 0.0
        %796 = vmatprep.subr.mxu0 0.0
        %797 = vmatpush1.msra.mxu0 0.0
        %798 = vmatprep.subr.mxu0 0.0
        %799 = vmatpush1.msra.mxu0 0.0
        %800 = vmatprep.subr.mxu0 0.0
        %801 = vmatpush1.msra.mxu0 0.0
        %802 = vmatprep.subr.mxu0 0.0
        %803 = vmatpush1.msra.mxu0 0.0
        %804 = vmatprep.subr.mxu0 0.0
        %805 = vmatpush1.msra.mxu0 0.0
        %806 = vmatprep.subr.mxu0 0.0
        %807 = vmatpush1.msra.mxu0 0.0
        %808 = vmatprep.subr.mxu0 0.0
        %809 = vmatpush1.msra.mxu0 0.0
        %810 = vmatprep.subr.mxu0 0.0
        %811 = vmatpush1.msra.mxu0 0.0
        %812 = vmatprep.subr.mxu0 0.0
        %813 = vmatpush1.msra.mxu0 0.0
        %814 = vmatprep.mubr.f32.mxu0 0.0
        %815 = vmatmul.mubr.f32.gmra.mrb[0].mxu0 %v748
        %v816 = vpop.f32.mrb[0].mxu0
        %v817 = vadd.f32 0.0, %v816
        %v818 = vpop.f32.mrb[0].mxu0
        %819 = vdwg.mxu0
        %v820 = vadd.f32 %v741, %v817
        %s821 = scalar_lea.vmem [#allocation6], 48
        %v822 = vld [vmem:[%s821] sm:$0xff]
        %823 = vrot.lane.b32.xlu0 %v350, 110
        %v824 = vpop.permute.xlu0 %823
        %v827 = vsel %vm358, %v822, 0
        %829 = vmatprep.subr.mxu0 0.0
        %830 = vmatpush1.msra.mxu0 %v824
        %831 = vmatprep.subr.mxu0 0.0
        %832 = vmatpush1.msra.mxu0 0.0
        %833 = vmatprep.subr.mxu0 0.0
        %834 = vmatpush1.msra.mxu0 0.0
        %835 = vmatprep.subr.mxu0 0.0
        %836 = vmatpush1.msra.mxu0 0.0
        %837 = vmatprep.subr.mxu0 0.0
        %838 = vmatpush1.msra.mxu0 0.0
        %839 = vmatprep.subr.mxu0 0.0
        %840 = vmatpush1.msra.mxu0 0.0
        %841 = vmatprep.subr.mxu0 0.0
        %842 = vmatpush1.msra.mxu0 0.0
        %843 = vmatprep.subr.mxu0 0.0
        %844 = vmatpush1.msra.mxu0 0.0
        %845 = vmatprep.subr.mxu0 0.0
        %846 = vmatpush1.msra.mxu0 0.0
        %847 = vmatprep.subr.mxu0 0.0
        %848 = vmatpush1.msra.mxu0 0.0
        %849 = vmatprep.subr.mxu0 0.0
        %850 = vmatpush1.msra.mxu0 0.0
        %851 = vmatprep.subr.mxu0 0.0
        %852 = vmatpush1.msra.mxu0 0.0
        %853 = vmatprep.subr.mxu0 0.0
        %854 = vmatpush1.msra.mxu0 0.0
        %855 = vmatprep.subr.mxu0 0.0
        %856 = vmatpush1.msra.mxu0 0.0
        %857 = vmatprep.subr.mxu0 0.0
        %858 = vmatpush1.msra.mxu0 0.0
        %859 = vmatprep.subr.mxu0 0.0
        %860 = vmatpush1.msra.mxu0 0.0
        %861 = vmatprep.subr.mxu0 0.0
        %862 = vmatpush1.msra.mxu0 0.0
        %863 = vmatprep.subr.mxu0 0.0
        %864 = vmatpush1.msra.mxu0 0.0
        %865 = vmatprep.subr.mxu0 0.0
        %866 = vmatpush1.msra.mxu0 0.0
        %867 = vmatprep.subr.mxu0 0.0
        %868 = vmatpush1.msra.mxu0 0.0
        %869 = vmatprep.subr.mxu0 0.0
        %870 = vmatpush1.msra.mxu0 0.0
        %871 = vmatprep.subr.mxu0 0.0
        %872 = vmatpush1.msra.mxu0 0.0
        %873 = vmatprep.subr.mxu0 0.0
        %874 = vmatpush1.msra.mxu0 0.0
        %875 = vmatprep.subr.mxu0 0.0
        %876 = vmatpush1.msra.mxu0 0.0
        %877 = vmatprep.subr.mxu0 0.0
        %878 = vmatpush1.msra.mxu0 0.0
        %879 = vmatprep.subr.mxu0 0.0
        %880 = vmatpush1.msra.mxu0 0.0
        %881 = vmatprep.subr.mxu0 0.0
        %882 = vmatpush1.msra.mxu0 0.0
        %883 = vmatprep.subr.mxu0 0.0
        %884 = vmatpush1.msra.mxu0 0.0
        %885 = vmatprep.subr.mxu0 0.0
        %886 = vmatpush1.msra.mxu0 0.0
        %887 = vmatprep.subr.mxu0 0.0
        %888 = vmatpush1.msra.mxu0 0.0
        %889 = vmatprep.subr.mxu0 0.0
        %890 = vmatpush1.msra.mxu0 0.0
        %891 = vmatprep.subr.mxu0 0.0
        %892 = vmatpush1.msra.mxu0 0.0
        %893 = vmatprep.mubr.f32.mxu0 0.0
        %894 = vmatmul.mubr.f32.gmra.mrb[0].mxu0 %v827
        %v895 = vpop.f32.mrb[0].mxu0
        %v896 = vadd.f32 0.0, %v895
        %v897 = vpop.f32.mrb[0].mxu0
        %898 = vdwg.mxu0
        %v899 = vadd.f32 %v820, %v896
        %v900 = vld [vmem:[%s3] sm:$0xff]
        %902 = vset.pattern.permute.xlu0 0
        %903 = vperm.xlu0 %902, %v900
        %v904 = vpop.permute.xlu0 %903
        %v906 = vadd.f32 %v899, %v904
        %vm907 = vcmp.gt.f32.partialorder %v906, 0.0
        %v908 = vmul.f32 %v906, 1.442695
        %v909 = vpow.pop %v908
        %v910 = vsub.f32 %v909, 1.0
        %v911 = vsel %vm907, %v906, %v910
        %v912 = vld [vmem:[%s4] sm:$0xff]
        %v913 = vld [vmem:[%s5] sm:$0xff]
        %915 = vset.pattern.permute.xlu0 0
        %916 = vperm.xlu0 %915, %v913
        %v917 = vpop.permute.xlu0 %916
        %v920 = vsel %vm358, %v912, 0
        %922 = vmatprep.subr.mxu0 0.0
        %923 = vmatpush1.msra.mxu0 %v911
        %924 = vmatprep.subr.mxu0 0.0
        %925 = vmatpush1.msra.mxu0 0.0
        %926 = vmatprep.subr.mxu0 0.0
        %927 = vmatpush1.msra.mxu0 0.0
        %928 = vmatprep.subr.mxu0 0.0
        %929 = vmatpush1.msra.mxu0 0.0
        %930 = vmatprep.subr.mxu0 0.0
        %931 = vmatpush1.msra.mxu0 0.0
        %932 = vmatprep.subr.mxu0 0.0
        %933 = vmatpush1.msra.mxu0 0.0
        %934 = vmatprep.subr.mxu0 0.0
        %935 = vmatpush1.msra.mxu0 0.0
        %936 = vmatprep.subr.mxu0 0.0
        %937 = vmatpush1.msra.mxu0 0.0
        %938 = vmatprep.subr.mxu0 0.0
        %939 = vmatpush1.msra.mxu0 0.0
        %940 = vmatprep.subr.mxu0 0.0
        %941 = vmatpush1.msra.mxu0 0.0
        %942 = vmatprep.subr.mxu0 0.0
        %943 = vmatpush1.msra.mxu0 0.0
        %944 = vmatprep.subr.mxu0 0.0
        %945 = vmatpush1.msra.mxu0 0.0
        %946 = vmatprep.subr.mxu0 0.0
        %947 = vmatpush1.msra.mxu0 0.0
        %948 = vmatprep.subr.mxu0 0.0
        %949 = vmatpush1.msra.mxu0 0.0
        %950 = vmatprep.subr.mxu0 0.0
        %951 = vmatpush1.msra.mxu0 0.0
        %952 = vmatprep.subr.mxu0 0.0
        %953 = vmatpush1.msra.mxu0 0.0
        %954 = vmatprep.subr.mxu0 0.0
        %955 = vmatpush1.msra.mxu0 0.0
        %956 = vmatprep.subr.mxu0 0.0
        %957 = vmatpush1.msra.mxu0 0.0
        %958 = vmatprep.subr.mxu0 0.0
        %959 = vmatpush1.msra.mxu0 0.0
        %960 = vmatprep.subr.mxu0 0.0
        %961 = vmatpush1.msra.mxu0 0.0
        %962 = vmatprep.subr.mxu0 0.0
        %963 = vmatpush1.msra.mxu0 0.0
        %964 = vmatprep.subr.mxu0 0.0
        %965 = vmatpush1.msra.mxu0 0.0
        %966 = vmatprep.subr.mxu0 0.0
        %967 = vmatpush1.msra.mxu0 0.0
        %968 = vmatprep.subr.mxu0 0.0
        %969 = vmatpush1.msra.mxu0 0.0
        %970 = vmatprep.subr.mxu0 0.0
        %971 = vmatpush1.msra.mxu0 0.0
        %972 = vmatprep.subr.mxu0 0.0
        %973 = vmatpush1.msra.mxu0 0.0
        %974 = vmatprep.subr.mxu0 0.0
        %975 = vmatpush1.msra.mxu0 0.0
        %976 = vmatprep.subr.mxu0 0.0
        %977 = vmatpush1.msra.mxu0 0.0
        %978 = vmatprep.subr.mxu0 0.0
        %979 = vmatpush1.msra.mxu0 0.0
        %980 = vmatprep.subr.mxu0 0.0
        %981 = vmatpush1.msra.mxu0 0.0
        %982 = vmatprep.subr.mxu0 0.0
        %983 = vmatpush1.msra.mxu0 0.0
        %984 = vmatprep.subr.mxu0 0.0
        %985 = vmatpush1.msra.mxu0 0.0
        %986 = vmatprep.mubr.f32.mxu0 0.0
        %987 = vmatmul.mubr.f32.gmra.mrb[0].mxu0 %v920
        %v988 = vpop.f32.mrb[0].mxu0
        %v989 = vadd.f32 %v917, %v988
        %v990 = vpop.f32.mrb[0].mxu0
        %991 = vdwg.mxu0
        %v992 = vadd.f32 %v989, %v327
        %vm993 = vcmask 130048
        %994 = vst.msk [vmem:[%s319] sm:$0xff] %vm993, %v992
        %s995 = sand.u32 %s186, 1
        %s996 = scalar_lea.sflag [#allocation5], %s995
        %s997 = sand.u32 %s186, 1
        %s998 = smul.addr %s997, 8
        %s999 = scalar_lea.vmem [#allocation8], %s998
        // Predicated region
        $region53: #{tpu_custom_call.1} parent=43 // pred_check
          %p1000 = pneg %p196
        $region54: #{tpu_custom_call.1} parent=43 // pred_check_branch
          %1002 = sbr.rel (%p1000) target = $region56
        $region55: #{tpu_custom_call.1} parent=43 // pred_region
          %s1004 = ssub.s32 128, 128
          %1005 = vsyncadd %s996, %s1004
          %s1006 = sadd.s32 %s29, %s28
          %s1007 = smul.addr %s1006, 128
          %s1008 = scalar_lea.hbm %s6, %s1007
          %s1010 = sshll.u32 %s999, 4
          %s1011 = int_to_ptr.vmem [resolvable:$true] %s1010
          %1013 = dma.vmem_to_hbm [thread:$0]  %s1011, 128, %s1008, %s996
        $region56: #{tpu_custom_call.1} parent=43 // pred_fallthru
          _
      $region44: #{tpu_custom_call.1} parent=5 // pred_fallthru
        _
      %p1014 = scmp.le.s32.totalorder 2, %s19
      // Predicated region
      $region57: #{tpu_custom_call.1} parent=5 // pred_check
        %p1015 = pneg %p1014
      $region58: #{tpu_custom_call.1} parent=5 // pred_check_branch
        %1017 = sbr.rel (%p1015) target = $region60
      $region59: #{tpu_custom_call.1} parent=5 // pred_region
        %s1018 = ssub.s32 %s19, 2
        // Predicated region
        $region61: #{tpu_custom_call.1} parent=59 // pred_check
          %p1019 = pneg %p202
        $region62: #{tpu_custom_call.1} parent=59 // pred_check_branch
          %1021 = sbr.rel (%p1019) target = $region64
        $region63: #{tpu_custom_call.1} parent=59 // pred_region
          %s1022 = sand.u32 %s187, 1
          %s1023 = scalar_lea.sflag [#allocation5], %s1022
          %s1024 = sand.u32 %s187, 1
          %s1025 = smul.addr %s1024, 8
          %s1026 = scalar_lea.vmem [#allocation8], %s1025
          %1027 = dma.done %s1023, 128
        $region64: #{tpu_custom_call.1} parent=59 // pred_fallthru
          _
      $region60: #{tpu_custom_call.1} parent=5 // pred_fallthru
        _
    $region6: #{tpu_custom_call.1} parent=1 // loop_footer
      %s23 = sadd.s32 1, %s19
    $region7: #{tpu_custom_call.1} parent=1 // loop_footer_branch
      %18 = sbr.rel target = $region3
    $region8: #{tpu_custom_call.1} parent=1 // loop_exit
      _
    %1028 = vsyncpa [#allocation4], 1
    %s1029 = scalar_lea.sflag [#allocation4], 1
    %1030 = vsyncpa %s1029, 1
    %1031 = vsyncpa [#allocation7], 1
    %1032 = vsyncpa [#allocation5], 1
    %s1033 = scalar_lea.sflag [#allocation5], 1
    %1034 = vsyncpa %s1033, 1

</llo_original>
